<compile_context>
chip_gen: v7x
topology: tpu7x:2x2x1
jax: 0.10.0
libtpu: 0.0.40
codegen_flags: <defaults>
</compile_context>

<pallas_src>
import functools

import jax
import jax.numpy as jnp
from jax.experimental import pallas as pl
from jax.experimental.pallas import tpu as pltpu


def _round_up(x, m):
    return ((x + m - 1) // m) * m


def _message_agg_kernel(path_ref, x_ref, o_ref, acc_ref, rsum_ref, *, agg_mean):
    # path_ref: (tt, ts) bf16, x_ref: (ts, td) bf16, o_ref: (tt, td)
    # acc_ref:  (tt, td) f32 scratch, rsum_ref: (tt, 1) f32 scratch
    s = pl.program_id(3)
    ns = pl.num_programs(3)

    @pl.when(s == 0)
    def _init():
        acc_ref[...] = jnp.zeros_like(acc_ref)
        if agg_mean:
            rsum_ref[...] = jnp.zeros_like(rsum_ref)

    p = path_ref[...]                                  # (tt, ts) bf16
    x = x_ref[...]                                     # (ts, td) bf16
    acc_ref[...] += jnp.dot(p, x, preferred_element_type=jnp.float32)
    if agg_mean:
        rsum_ref[...] += jnp.sum(p, axis=-1, keepdims=True, dtype=jnp.float32)

    @pl.when(s == ns - 1)
    def _finalize():
        acc = acc_ref[...]
        if agg_mean:
            rs = rsum_ref[...]
            inv = jnp.where(rs == 0.0, 0.0, 1.0 / rs)  # exact; matches isinf->0
            acc = inv * acc
        o_ref[...] = acc.astype(o_ref.dtype)


def message_agg(X, path, agg_method="mean", *, tt=512, ts=512, td=256):
    """X: [B, S, D], path: [B, T, S] -> [B, T, D] (dtype of X)."""
    B, T, S = path.shape
    Bx, Sx, D = X.shape
    assert B == Bx and S == Sx

    out_dtype = X.dtype

    # Adapt tile sizes to small problems (keep (8, 128) layout legality),
    # cap at portable defaults that fit well inside v5e/v6e/v7x VMEM.
    tt = min(tt, _round_up(T, 8))
    ts = min(ts, _round_up(S, 128))
    td = min(td, _round_up(D, 128))

    Tp, Sp, Dp = _round_up(T, tt), _round_up(S, ts), _round_up(D, td)

    # bf16 compute: path is 0/1 (exact in bf16); f32 accumulation inside kernel.
    path_c = path.astype(jnp.bfloat16)
    x_c = X.astype(jnp.bfloat16)
    if (Tp, Sp) != (T, S):
        path_c = jnp.pad(path_c, ((0, 0), (0, Tp - T), (0, Sp - S)))
    if (Sp, Dp) != (S, D):
        x_c = jnp.pad(x_c, ((0, 0), (0, Sp - S), (0, Dp - D)))

    grid = (B, Tp // tt, Dp // td, Sp // ts)
    agg_mean = agg_method == "mean"
    kernel = functools.partial(_message_agg_kernel, agg_mean=agg_mean)

    out_bytes = B * Tp * Dp * jnp.dtype(out_dtype).itemsize
    cost = pl.CostEstimate(
        flops=2 * B * Tp * Sp * Dp,
        transcendentals=0,
        bytes_accessed=path_c.size * 2 + x_c.size * 2 + out_bytes,
    )

    out = pl.pallas_call(
        kernel,
        out_shape=jax.ShapeDtypeStruct((B, Tp, Dp), out_dtype),
        grid_spec=pltpu.PrefetchScalarGridSpec(
            num_scalar_prefetch=0,
            grid=grid,
            in_specs=[
                # batch squeezed out -> 2-D tiles inside the kernel
                pl.BlockSpec((None, tt, ts), lambda b, t, d, s: (b, t, s)),
                pl.BlockSpec((None, ts, td), lambda b, t, d, s: (b, s, d)),
            ],
            out_specs=pl.BlockSpec((None, tt, td), lambda b, t, d, s: (b, t, d)),
            scratch_shapes=[
                pltpu.VMEM((tt, td), jnp.float32),  # matmul accumulator
                pltpu.VMEM((tt, 1), jnp.float32),   # row-sum accumulator
            ],
        ),
        compiler_params=pltpu.CompilerParams(
            dimension_semantics=("parallel", "parallel", "parallel", "arbitrary"),
            vmem_limit_bytes=48 * 1024 * 1024,
        ),
        cost_estimate=cost,
    )(path_c, x_c)

    if (Tp, Dp) != (T, D):
        out = out[:, :T, :D]
    return out


def _reference(X, path, agg_method="mean"):
    # Mirror the kernel's compute dtype: bf16 operands, f32 math.
    p = path.astype(jnp.bfloat16).astype(jnp.float32)
    x = X.astype(jnp.bfloat16).astype(jnp.float32)
    out = jnp.einsum("bts,bsd->btd", p, x)
    if agg_method == "mean":
        row_sum = jnp.sum(p, axis=2, keepdims=True)
        inv = 1.0 / row_sum
        inv = jnp.where(jnp.isinf(inv), 0.0, inv)
        out = inv * out
    return out.astype(X.dtype)


if __name__ == "__main__":
    key = jax.random.PRNGKey(0)
    k1, k2 = jax.random.split(key)

    # batch, n_target (hyperedges), n_source (nodes), hidden dim
    B, T, S, D = 2, 16, 8, 32

    X = jax.random.normal(k1, (B, S, D), dtype=jnp.float32)
    # Sparse-ish 0/1 incidence; force an all-zero row to exercise inf -> 0.
    path = (jax.random.uniform(k2, (B, T, S)) > 0.6).astype(jnp.float32)
    path = path.at[:, 0, :].set(0.0)

    out_mean = jax.block_until_ready(message_agg(X, path, agg_method="mean"))
    out_sum = jax.block_until_ready(message_agg(X, path, agg_method="sum"))

    ref_mean = _reference(X, path, agg_method="mean")
    ref_sum = _reference(X, path, agg_method="sum")

    assert out_mean.shape == (B, T, D)
    assert out_sum.shape == (B, T, D)
    assert jnp.allclose(out_mean, ref_mean, atol=1e-4, rtol=1e-4), "mean mismatch"
    assert jnp.allclose(out_sum, ref_sum, atol=1e-4, rtol=1e-4), "sum mismatch"

    print("KERNEL_OK")
</pallas_src>

<mosaic_0001>
module attributes {stable_mosaic.version = 11 : i64} {
  func.func @_message_agg_kernel(%arg0: i32, %arg1: i32, %arg2: i32, %arg3: i32, %arg4: memref<1x16x128xbf16, #tpu.memory_space<vmem>>, %arg5: memref<1x128x128xbf16, #tpu.memory_space<vmem>>, %arg6: memref<1x16x128xf32, #tpu.memory_space<vmem>>, %arg7: memref<16x128xf32, #tpu.memory_space<vmem>>, %arg8: memref<16x1xf32, #tpu.memory_space<vmem>>) attributes {dimension_semantics = [#tpu.dimension_semantics<parallel>, #tpu.dimension_semantics<parallel>, #tpu.dimension_semantics<parallel>, #tpu.dimension_semantics<arbitrary>], iteration_bounds = array<i64: 2, 1, 1, 1>, scalar_prefetch = 0 : i64, scratch_operands = 2 : i64, tpu.core_type = #tpu.core_type<tc>, window_params = [{transform_indices = @transform_0, window_bounds = array<i64: 1, 16, 128>}, {transform_indices = @transform_1, window_bounds = array<i64: 1, 128, 128>}, {transform_indices = @transform_2, window_bounds = array<i64: 1, 16, 128>}]} {
    %c0_i32 = arith.constant 0 : i32
    %0 = arith.cmpi eq, %arg3, %c0_i32 : i32
    %1 = arith.extui %0 : i1 to i32
    %c0_i32_0 = arith.constant 0 : i32
    %2 = arith.cmpi ne, %1, %c0_i32_0 : i32
    scf.if %2 {
      %cst_17 = arith.constant 0.000000e+00 : f32
      %20 = vector.broadcast %cst_17 : f32 to vector<16x128xf32>
      %c0_18 = arith.constant 0 : index
      %c0_19 = arith.constant 0 : index
      %21 = vector.load %arg7[%c0_18, %c0_19] : memref<16x128xf32, #tpu.memory_space<vmem>>, vector<16x128xf32>
      tpu.vector_store %arg7[%c0_18, %c0_19], %20 {strides = array<i32>} : memref<16x128xf32, #tpu.memory_space<vmem>>, vector<16x128xf32>,
      %cst_20 = arith.constant 0.000000e+00 : f32
      %22 = vector.broadcast %cst_20 : f32 to vector<16x1xf32>
      %c0_21 = arith.constant 0 : index
      %c0_22 = arith.constant 0 : index
      %23 = vector.load %arg8[%c0_21, %c0_22] : memref<16x1xf32, #tpu.memory_space<vmem>>, vector<16x1xf32>
      tpu.vector_store %arg8[%c0_21, %c0_22], %22 {strides = array<i32>} : memref<16x1xf32, #tpu.memory_space<vmem>>, vector<16x1xf32>,
    } else {
    }
    %c0 = arith.constant 0 : index
    %c0_1 = arith.constant 0 : index
    %c0_2 = arith.constant 0 : index
    %3 = vector.load %arg4[%c0, %c0_1, %c0_2] : memref<1x16x128xbf16, #tpu.memory_space<vmem>>, vector<1x16x128xbf16>
    %4 = vector.shape_cast %3 : vector<1x16x128xbf16> to vector<16x128xbf16>
    %c0_3 = arith.constant 0 : index
    %c0_4 = arith.constant 0 : index
    %c0_5 = arith.constant 0 : index
    %5 = vector.load %arg5[%c0_3, %c0_4, %c0_5] : memref<1x128x128xbf16, #tpu.memory_space<vmem>>, vector<1x128x128xbf16>
    %6 = vector.shape_cast %5 : vector<1x128x128xbf16> to vector<128x128xbf16>
    %c0_6 = arith.constant 0 : index
    %c0_7 = arith.constant 0 : index
    %7 = vector.load %arg7[%c0_6, %c0_7] : memref<16x128xf32, #tpu.memory_space<vmem>>, vector<16x128xf32>
    %cst = arith.constant dense<0.000000e+00> : vector<16x128xf32>
    %8 = tpu.matmul %4, %6, %cst {dimension_numbers = #tpu.dot_dimension_numbers<[1], [0], [0], [1], [0, 0, 1, 1], [], []>} : vector<16x128xbf16>, vector<128x128xbf16>, vector<16x128xf32> -> vector<16x128xf32>
    %9 = arith.addf %7, %8 : vector<16x128xf32>
    %c0_8 = arith.constant 0 : index
    %c0_9 = arith.constant 0 : index
    %10 = vector.load %arg7[%c0_8, %c0_9] : memref<16x128xf32, #tpu.memory_space<vmem>>, vector<16x128xf32>
    tpu.vector_store %arg7[%c0_8, %c0_9], %9 {strides = array<i32>} : memref<16x128xf32, #tpu.memory_space<vmem>>, vector<16x128xf32>,
    %c0_10 = arith.constant 0 : index
    %c0_11 = arith.constant 0 : index
    %11 = vector.load %arg8[%c0_10, %c0_11] : memref<16x1xf32, #tpu.memory_space<vmem>>, vector<16x1xf32>
    %12 = arith.extf %4 : vector<16x128xbf16> to vector<16x128xf32>
    %cst_12 = arith.constant dense<0.000000e+00> : vector<16xf32>
    %13 = vector.multi_reduction <add>, %12, %cst_12 [1] : vector<16x128xf32> to vector<16xf32>
    %14 = vector.shape_cast %13 : vector<16xf32> to vector<16x1xf32>
    %15 = arith.addf %11, %14 : vector<16x1xf32>
    %c0_13 = arith.constant 0 : index
    %c0_14 = arith.constant 0 : index
    %16 = vector.load %arg8[%c0_13, %c0_14] : memref<16x1xf32, #tpu.memory_space<vmem>>, vector<16x1xf32>
    tpu.vector_store %arg8[%c0_13, %c0_14], %15 {strides = array<i32>} : memref<16x1xf32, #tpu.memory_space<vmem>>, vector<16x1xf32>,
    %c0_i32_15 = arith.constant 0 : i32
    %17 = arith.cmpi eq, %arg3, %c0_i32_15 : i32
    %18 = arith.extui %17 : i1 to i32
    %c0_i32_16 = arith.constant 0 : i32
    %19 = arith.cmpi ne, %18, %c0_i32_16 : i32
    scf.if %19 {
      %c0_17 = arith.constant 0 : index
      %c0_18 = arith.constant 0 : index
      %20 = vector.load %arg7[%c0_17, %c0_18] : memref<16x128xf32, #tpu.memory_space<vmem>>, vector<16x128xf32>
      %c0_19 = arith.constant 0 : index
      %c0_20 = arith.constant 0 : index
      %21 = vector.load %arg8[%c0_19, %c0_20] : memref<16x1xf32, #tpu.memory_space<vmem>>, vector<16x1xf32>
      %cst_21 = arith.constant 0.000000e+00 : f32
      %22 = vector.broadcast %cst_21 : f32 to vector<16x1xf32>
      %23 = arith.cmpf oeq, %21, %22 : vector<16x1xf32>
      %cst_22 = arith.constant 1.000000e+00 : f32
      %24 = vector.broadcast %cst_22 : f32 to vector<16x1xf32>
      %25 = arith.divf %24, %21 : vector<16x1xf32>
      %cst_23 = arith.constant 0.000000e+00 : f32
      %26 = vector.broadcast %cst_23 : f32 to vector<16x1xf32>
      %27 = arith.select %23, %26, %25 : vector<16x1xi1>, vector<16x1xf32>
      %28 = vector.broadcast %27 : vector<16x1xf32> to vector<16x128xf32>
      %29 = arith.mulf %28, %20 : vector<16x128xf32>
      %c0_24 = arith.constant 0 : index
      %c0_25 = arith.constant 0 : index
      %c0_26 = arith.constant 0 : index
      %30 = vector.load %arg6[%c0_24, %c0_25, %c0_26] : memref<1x16x128xf32, #tpu.memory_space<vmem>>, vector<1x16x128xf32>
      %31 = vector.shape_cast %30 : vector<1x16x128xf32> to vector<16x128xf32>
      %32 = vector.shape_cast %29 : vector<16x128xf32> to vector<1x16x128xf32>
      tpu.vector_store %arg6[%c0_24, %c0_25, %c0_26], %32 {strides = array<i32>} : memref<1x16x128xf32, #tpu.memory_space<vmem>>, vector<1x16x128xf32>,
    } else {
    }
    return
  }
  func.func @transform_0(%arg0: i32, %arg1: i32, %arg2: i32, %arg3: i32) -> (i32, i32, i32) {
    %c0_i32 = arith.constant 0 : i32
    return %arg0, %arg1, %arg3 : i32, i32, i32
  }
  func.func @transform_1(%arg0: i32, %arg1: i32, %arg2: i32, %arg3: i32) -> (i32, i32, i32) {
    %c0_i32 = arith.constant 0 : i32
    return %arg0, %arg3, %arg2 : i32, i32, i32
  }
  func.func @transform_2(%arg0: i32, %arg1: i32, %arg2: i32, %arg3: i32) -> (i32, i32, i32) {
    %c0_i32 = arith.constant 0 : i32
    return %arg0, %arg1, %arg2 : i32, i32, i32
  }
}

</mosaic_0001>

<llo_original>
// kernel: tpu_custom_call.1
$region0: #{tpu_custom_call.1}
  #allocation0 [shape = 'u32[]', space=smem, size = 0x4, offset = 0x4, fixed_abs, tag = 'smem constant byte address 0x4 - core index']
  #allocation1 [shape = 'u32[144,128]{1,0:T(1,128)}', space=vmem, size = 0x12000, scoped, tag = 'internal scratch']
  #allocation2 [shape = 'f32[16,128]{1,0:T(8,128)}', space=vmem, size = 0x2000, scoped, tag = 'scratch operand']
  #allocation3 [shape = 'f32[16,1]{1,0:T(8,128)}', space=vmem, size = 0x2000, scoped, tag = 'scratch operand']
  %s0 = inlined_call_operand.hbm [shape: bf16[2,16,128], index: 0, kind: input, shape index: {}]
  %s1 = inlined_call_operand.hbm [shape: bf16[2,128,128], index: 1, kind: input, shape index: {}]
  %s2 = inlined_call_operand.hbm [shape: f32[2,16,128], index: 2, kind: output, shape index: {}]
  %s3 = sld [smem:[#allocation0]]
  $region57: #{tpu_custom_call.1} parent=0
    _
  %s5 = ssub.s32 1, %s3
  %s6 = scalar_select 0, %s5, %s3
  $region1: #{tpu_custom_call.1} parent=0
    #allocation4 [shape = 'u8[8192]{0}', space=vmem, size = 0x2000, scoped, tag = 'input window, operand 0']
    #allocation5 [shape = 's32[2]{0}', space=sflag, size = 0x8, scoped, tag = 'scoped memory for tpu_custom_call.1']
    #allocation6 [shape = 's32[2]{0}', space=sflag, size = 0x8, scoped, tag = 'scoped memory for tpu_custom_call.1']
    #allocation7 [shape = 'u8[65536]{0}', space=vmem, size = 0x10000, scoped, tag = 'input window, operand 1']
    #allocation8 [shape = 's32[2]{0}', space=sflag, size = 0x8, scoped, tag = 'scoped memory for tpu_custom_call.1']
    #allocation9 [shape = 'u8[16384]{0}', space=vmem, size = 0x4000, scoped, tag = 'output window, operand 0']
    %7 = vsyncpa [#allocation5], 0
    %s8 = scalar_lea.sflag [#allocation5], 1
    %9 = vsyncpa %s8, 0
    %10 = vsyncpa [#allocation8], 0
    %s11 = scalar_lea.sflag [#allocation8], 1
    %12 = vsyncpa %s11, 0
    %13 = vsyncpa [#allocation6], 0
    %s14 = scalar_lea.sflag [#allocation6], 1
    %15 = vsyncpa %s14, 0
    loop: start=0, step=1, limit=4
    $region2: #{tpu_custom_call.1} parent=1 // loop_pre_header
      _
    $region3: #{tpu_custom_call.1} parent=1 // loop_header
      %s17 = sphi 0, %s21
      %p18 = scmp.ge.s32.totalorder %s17, 4
      %s24 = sphi 0, %s50
      %s25 = sphi 0, %s46
      %s26 = sphi 0, %s42
      %s27 = sphi 0, %s38
      %s28 = sphi 0, %s24
      %s29 = sphi 0, %s25
      %s30 = sphi 0, %s26
      %s31 = sphi 0, %s27
      %s32 = sphi 0, %s28
      %s33 = sphi 0, %s29
      %s34 = sphi 0, %s30
      %s35 = sphi 0, %s31
      %s57 = sphi 0, %s59
      %s60 = sphi 0, %s57
      %s61 = sphi 0, %s60
      %s77 = sphi 0, %s61
      %s87 = sphi 0, %s89
      %s90 = sphi 0, %s87
      %s91 = sphi 0, %s90
      %s107 = sphi 0, %s91
      %s117 = sphi 0, %s119
      %s120 = sphi 0, %s117
      %s121 = sphi 0, %s120
      %s137 = sphi 0, %s121
    $region4: #{tpu_custom_call.1} parent=1 // loop_header_branch
      %20 = sbr.rel (%p18) target = $region8
    $region5: #{tpu_custom_call.1} parent=1 // loop_body
      %s22 = ssub.s32 %s17, 1
      %s23 = ssub.s32 %s17, 2
      %s36 = sadd.s32 1, %s27
      %p37 = scmp.ge.s32.totalorder %s36, 1
      %s38 = scalar_select %p37, 0, %s36
      %s39 = sadd.s32 1, %s26
      %s40 = scalar_select %p37, %s39, %s26
      %p41 = scmp.ge.s32.totalorder %s40, 1
      %s42 = scalar_select %p41, 0, %s40
      %s43 = sadd.s32 1, %s25
      %s44 = scalar_select %p41, %s43, %s25
      %p45 = scmp.ge.s32.totalorder %s44, 1
      %s46 = scalar_select %p45, 0, %s44
      %s47 = sadd.s32 1, %s24
      %s48 = scalar_select %p45, %s47, %s24
      %p49 = scmp.ge.s32.totalorder %s48, 2
      %s50 = scalar_select %p49, 0, %s48
      %s51 = ssub.s32 %s24, %s50
      %s52 = ssub.s32 %s25, %s46
      %s53 = sor.u32 %s51, %s52
      %s54 = ssub.s32 %s27, %s38
      %s55 = sor.u32 %s53, %s54
      %p56 = scmp.eq.s32.totalorder %s55, 0
      %s58 = sadd.s32 %s57, 1
      %s59 = scalar_select %p56, %s57, %s58
      %p62 = pneg %p56
      %p63 = scmp.eq.s32.totalorder %s17, 1
      %p64 = por %p62, %p63
      %p65 = scmp.ne.s32.totalorder %s57, %s60
      %p66 = scmp.eq.s32.totalorder %s17, 0
      %p67 = por %p65, %p66
      %p68 = scmp.ne.s32.totalorder %s57, %s60
      %p69 = scmp.eq.s32.totalorder %s22, 1
      %p70 = por %p68, %p69
      %p71 = scmp.ne.s32.totalorder %s60, %s61
      %p72 = scmp.eq.s32.totalorder %s22, 0
      %p73 = por %p71, %p72
      %p74 = scmp.ne.s32.totalorder %s60, %s61
      %p75 = scmp.eq.s32.totalorder %s23, 1
      %p76 = por %p74, %p75
      %p78 = scmp.ne.s32.totalorder %s61, %s77
      %p79 = scmp.eq.s32.totalorder %s23, 0
      %p80 = por %p78, %p79
      %s81 = ssub.s32 %s24, %s50
      %s82 = ssub.s32 %s27, %s38
      %s83 = sor.u32 %s81, %s82
      %s84 = ssub.s32 %s26, %s42
      %s85 = sor.u32 %s83, %s84
      %p86 = scmp.eq.s32.totalorder %s85, 0
      %s88 = sadd.s32 %s87, 1
      %s89 = scalar_select %p86, %s87, %s88
      %p92 = pneg %p86
      %p93 = scmp.eq.s32.totalorder %s17, 1
      %p94 = por %p92, %p93
      %p95 = scmp.ne.s32.totalorder %s87, %s90
      %p96 = scmp.eq.s32.totalorder %s17, 0
      %p97 = por %p95, %p96
      %p98 = scmp.ne.s32.totalorder %s87, %s90
      %p99 = scmp.eq.s32.totalorder %s22, 1
      %p100 = por %p98, %p99
      %p101 = scmp.ne.s32.totalorder %s90, %s91
      %p102 = scmp.eq.s32.totalorder %s22, 0
      %p103 = por %p101, %p102
      %p104 = scmp.ne.s32.totalorder %s90, %s91
      %p105 = scmp.eq.s32.totalorder %s23, 1
      %p106 = por %p104, %p105
      %p108 = scmp.ne.s32.totalorder %s91, %s107
      %p109 = scmp.eq.s32.totalorder %s23, 0
      %p110 = por %p108, %p109
      %s111 = ssub.s32 %s24, %s50
      %s112 = ssub.s32 %s25, %s46
      %s113 = sor.u32 %s111, %s112
      %s114 = ssub.s32 %s26, %s42
      %s115 = sor.u32 %s113, %s114
      %p116 = scmp.eq.s32.totalorder %s115, 0
      %s118 = sadd.s32 %s117, 1
      %s119 = scalar_select %p116, %s117, %s118
      %p122 = pneg %p116
      %p123 = scmp.eq.s32.totalorder %s17, 1
      %p124 = por %p122, %p123
      %p125 = scmp.ne.s32.totalorder %s117, %s120
      %p126 = scmp.eq.s32.totalorder %s17, 0
      %p127 = por %p125, %p126
      %p128 = scmp.ne.s32.totalorder %s117, %s120
      %p129 = scmp.eq.s32.totalorder %s22, 1
      %p130 = por %p128, %p129
      %p131 = scmp.ne.s32.totalorder %s120, %s121
      %p132 = scmp.eq.s32.totalorder %s22, 0
      %p133 = por %p131, %p132
      %p134 = scmp.ne.s32.totalorder %s120, %s121
      %p135 = scmp.eq.s32.totalorder %s23, 1
      %p136 = por %p134, %p135
      %p138 = scmp.ne.s32.totalorder %s121, %s137
      %p139 = scmp.eq.s32.totalorder %s23, 0
      %p140 = por %p138, %p139
      %p141 = scmp.le.s32.totalorder 1, %s17
      %p142 = scmp.lt.s32.totalorder %s17, 3
      %p143 = pnand %p141, %p142
      %p144 = pneg %p143
      // Predicated region
      $region9: #{tpu_custom_call.1} parent=5 // pred_check
        _
      $region10: #{tpu_custom_call.1} parent=5 // pred_check_branch
        %146 = sbr.rel (%p143) target = $region12
      $region11: #{tpu_custom_call.1} parent=5 // pred_region
        %s147 = ssub.s32 %s17, 1
      $region12: #{tpu_custom_call.1} parent=5 // pred_fallthru
        _
      %p148 = scmp.lt.s32.totalorder %s17, 2
      // Predicated region
      $region13: #{tpu_custom_call.1} parent=5 // pred_check
        %p149 = pneg %p148
      $region14: #{tpu_custom_call.1} parent=5 // pred_check_branch
        %151 = sbr.rel (%p149) target = $region16
      $region15: #{tpu_custom_call.1} parent=5 // pred_region
        // Predicated region
        $region17: #{tpu_custom_call.1} parent=15 // pred_check
          %p152 = pneg %p67
        $region18: #{tpu_custom_call.1} parent=15 // pred_check_branch
          %154 = sbr.rel (%p152) target = $region20
        $region19: #{tpu_custom_call.1} parent=15 // pred_region
          %s155 = sand.u32 %s57, 1
          %s156 = scalar_lea.sflag [#allocation5], %s155
          %s157 = sand.u32 %s57, 1
          %s158 = smul.addr %s157, 8
          %s159 = scalar_lea.vmem [#allocation4], %s158
          %s160 = smul.u32 2, %s25
          %s162 = ssub.s32 128, 128
          %163 = vsyncadd %s156, %s162
          %s164 = sadd.s32 %s27, %s160
          %s165 = smul.addr %s24, 2
          %s166 = sadd.s32 %s164, %s165
          %s167 = smul.addr %s166, 64
          %s168 = scalar_lea.hbm %s0, %s167
          %s169 = sshll.u32 %s159, 4
          %s170 = int_to_ptr.vmem [resolvable:$true] %s169
          %175 = dma.hbm_to_vmem [thread:$0]  %s168, 128, %s170, %s156, 64, 64, 4
        $region20: #{tpu_custom_call.1} parent=15 // pred_fallthru
          _
        // Predicated region
        $region21: #{tpu_custom_call.1} parent=15 // pred_check
          %p176 = pneg %p97
        $region22: #{tpu_custom_call.1} parent=15 // pred_check_branch
          %178 = sbr.rel (%p176) target = $region24
        $region23: #{tpu_custom_call.1} parent=15 // pred_region
          %s179 = sand.u32 %s87, 1
          %s180 = scalar_lea.sflag [#allocation8], %s179
          %s181 = sand.u32 %s87, 1
          %s182 = smul.addr %s181, 64
          %s183 = scalar_lea.vmem [#allocation7], %s182
          %s184 = smul.u32 16, %s27
          %s186 = ssub.s32 1024, 1024
          %187 = vsyncadd %s180, %s186
          %s188 = sadd.s32 %s26, %s184
          %s189 = smul.addr %s24, 16
          %s190 = sadd.s32 %s188, %s189
          %s191 = smul.addr %s190, 64
          %s192 = scalar_lea.hbm %s1, %s191
          %s193 = sshll.u32 %s183, 4
          %s194 = int_to_ptr.vmem [resolvable:$true] %s193
          %199 = dma.hbm_to_vmem [thread:$0]  %s192, 1024, %s194, %s180, 64, 64, 4
        $region24: #{tpu_custom_call.1} parent=15 // pred_fallthru
          _
      $region16: #{tpu_custom_call.1} parent=5 // pred_fallthru
        _
      %p200 = scmp.le.s32.totalorder 1, %s17
      %p201 = scmp.lt.s32.totalorder %s17, 3
      %p202 = pnand %p200, %p201
      %p203 = pneg %p202
      // Predicated region
      $region25: #{tpu_custom_call.1} parent=5 // pred_check
        _
      $region26: #{tpu_custom_call.1} parent=5 // pred_check_branch
        %205 = sbr.rel (%p202) target = $region28
      $region27: #{tpu_custom_call.1} parent=5 // pred_region
        %s206 = ssub.s32 %s17, 1
        %s207 = sand.u32 %s60, 1
        %s208 = scalar_lea.sflag [#allocation5], %s207
        %s209 = sand.u32 %s60, 1
        %s210 = smul.addr %s209, 8
        %s211 = scalar_lea.vmem [#allocation4], %s210
        // Predicated region
        $region29: #{tpu_custom_call.1} parent=27 // pred_check
          %p212 = pneg %p73
        $region30: #{tpu_custom_call.1} parent=27 // pred_check_branch
          %214 = sbr.rel (%p212) target = $region32
        $region31: #{tpu_custom_call.1} parent=27 // pred_region
          %215 = dma.done %s208, 128
        $region32: #{tpu_custom_call.1} parent=27 // pred_fallthru
          _
        %s216 = sand.u32 %s90, 1
        %s217 = scalar_lea.sflag [#allocation8], %s216
        %s218 = sand.u32 %s90, 1
        %s219 = smul.addr %s218, 64
        %s220 = scalar_lea.vmem [#allocation7], %s219
        // Predicated region
        $region33: #{tpu_custom_call.1} parent=27 // pred_check
          %p221 = pneg %p103
        $region34: #{tpu_custom_call.1} parent=27 // pred_check_branch
          %223 = sbr.rel (%p221) target = $region36
        $region35: #{tpu_custom_call.1} parent=27 // pred_region
          %224 = dma.done %s217, 1024
        $region36: #{tpu_custom_call.1} parent=27 // pred_fallthru
          _
        %s225 = sand.u32 %s60, 1
        %s226 = scalar_lea.sflag [#allocation5], %s225
        %s227 = sand.u32 %s60, 1
        %s228 = smul.addr %s227, 8
        %s229 = scalar_lea.vmem [#allocation4], %s228
        %p230 = pneg %p73
        %p231 = pneg %p70
        %s232 = sand.u32 %s90, 1
        %s233 = scalar_lea.sflag [#allocation8], %s232
        %s234 = sand.u32 %s90, 1
        %s235 = smul.addr %s234, 64
        %s236 = scalar_lea.vmem [#allocation7], %s235
        %p237 = pneg %p103
        %p238 = pneg %p100
        %p239 = pneg %p133
        %p240 = pneg %p130
        %s241 = sand.u32 %s120, 1
        %s242 = scalar_lea.sflag [#allocation6], %s241
        %s243 = sand.u32 %s120, 1
        %s244 = smul.addr %s243, 16
        %s245 = scalar_lea.vmem [#allocation9], %s244
        %s246 = smul.u32 2, %s29
        %s247 = smul.u32 16, %s31
        %s248 = smul.u32 2, %s29
        %p250 = scmp.eq.s32.totalorder %s31, 0
        // Predicated region
        $region37: #{tpu_custom_call.1} parent=27 // pred_check
          %p251 = pneg %p250
        $region38: #{tpu_custom_call.1} parent=27 // pred_check_branch
          %253 = sbr.rel (%p251) target = $region40
        $region39: #{tpu_custom_call.1} parent=27 // pred_region
          %254 = vst [vmem:[#allocation2] sm:$0xff] 0.0
          %255 = vst [vmem:[#allocation2 + $0x8] sm:$0xff] 0.0
          %vm256 = vcmask 7168
          %257 = vst.msk [vmem:[#allocation3] sm:$0xff] %vm256, 0.0
          %258 = vst.msk [vmem:[#allocation3 + $0x8] sm:$0xff] %vm256, 0.0
        $region40: #{tpu_custom_call.1} parent=27 // pred_fallthru
          _
        %v259 = vld [vmem:[%s211] sm:$0xf]
        %v260 = vld [vmem:[%s211 + $0x4] sm:$0xf]
        %v261 = vld [vmem:[%s220] sm:$0xf]
        %v262 = vld [vmem:[%s220 + $0x4] sm:$0xf]
        %v263 = vld [vmem:[%s220 + $0x8] sm:$0xf]
        %v264 = vld [vmem:[%s220 + $0xc] sm:$0xf]
        %v265 = vld [vmem:[%s220 + $0x10] sm:$0xf]
        %v266 = vld [vmem:[%s220 + $0x14] sm:$0xf]
        %v267 = vld [vmem:[%s220 + $0x18] sm:$0xf]
        %v268 = vld [vmem:[%s220 + $0x1c] sm:$0xf]
        %v269 = vld [vmem:[%s220 + $0x20] sm:$0xf]
        %v270 = vld [vmem:[%s220 + $0x24] sm:$0xf]
        %v271 = vld [vmem:[%s220 + $0x28] sm:$0xf]
        %v272 = vld [vmem:[%s220 + $0x2c] sm:$0xf]
        %v273 = vld [vmem:[%s220 + $0x30] sm:$0xf]
        %v274 = vld [vmem:[%s220 + $0x34] sm:$0xf]
        %v275 = vld [vmem:[%s220 + $0x38] sm:$0xf]
        %v276 = vld [vmem:[%s220 + $0x3c] sm:$0xf]
        %v277 = vld [vmem:[#allocation2] sm:$0xff]
        %v278 = vld [vmem:[#allocation2 + $0x8] sm:$0xff]
        %v281 = vunpack.c.l.b16 %v259
        %v282 = vunpack.c.l.b16 %v260
        %v283 = vpack.c.b16 %v282, %v281
        %v301 = vunpack.c.l.b16 %v261
        %v302 = vunpack.c.l.b16 %v262
        %v303 = vunpack.c.l.b16 %v263
        %v304 = vunpack.c.l.b16 %v264
        %v305 = vunpack.c.l.b16 %v265
        %v306 = vunpack.c.l.b16 %v266
        %v307 = vunpack.c.l.b16 %v267
        %v308 = vunpack.c.l.b16 %v268
        %v309 = vunpack.c.l.b16 %v269
        %v310 = vunpack.c.l.b16 %v270
        %v311 = vunpack.c.l.b16 %v271
        %v312 = vunpack.c.l.b16 %v272
        %v313 = vunpack.c.l.b16 %v273
        %v314 = vunpack.c.l.b16 %v274
        %v315 = vunpack.c.l.b16 %v275
        %v316 = vunpack.c.l.b16 %v276
        %v317 = vpack.c.b16 %v302, %v301
        %v318 = vpack.c.b16 %v304, %v303
        %v319 = vpack.c.b16 %v306, %v305
        %v320 = vpack.c.b16 %v308, %v307
        %v321 = vpack.c.b16 %v310, %v309
        %v322 = vpack.c.b16 %v312, %v311
        %v323 = vpack.c.b16 %v314, %v313
        %v324 = vpack.c.b16 %v316, %v315
        %333 = vmatprep.subr.bf16.mxu0 0
        %334 = vmatpush1.bf16.msra.mxu0 %v317
        %335 = vmatprep.subr.bf16.mxu0 0
        %336 = vmatpush1.bf16.msra.mxu0 %v318
        %337 = vmatprep.subr.bf16.mxu0 0
        %338 = vmatpush1.bf16.msra.mxu0 %v319
        %339 = vmatprep.subr.bf16.mxu0 0
        %340 = vmatpush1.bf16.msra.mxu0 %v320
        %341 = vmatprep.subr.bf16.mxu0 0
        %342 = vmatpush1.bf16.msra.mxu0 %v321
        %343 = vmatprep.subr.bf16.mxu0 0
        %344 = vmatpush1.bf16.msra.mxu0 %v322
        %345 = vmatprep.subr.bf16.mxu0 0
        %346 = vmatpush1.bf16.msra.mxu0 %v323
        %347 = vmatprep.subr.bf16.mxu0 0
        %348 = vmatpush1.bf16.msra.mxu0 %v324
        %349 = vmatprep.subr.bf16.mxu0 0
        %350 = vmatpush1.bf16.msra.mxu0 0
        %351 = vmatprep.subr.bf16.mxu0 0
        %352 = vmatpush1.bf16.msra.mxu0 0
        %353 = vmatprep.subr.bf16.mxu0 0
        %354 = vmatpush1.bf16.msra.mxu0 0
        %355 = vmatprep.subr.bf16.mxu0 0
        %356 = vmatpush1.bf16.msra.mxu0 0
        %357 = vmatprep.subr.bf16.mxu0 0
        %358 = vmatpush1.bf16.msra.mxu0 0
        %359 = vmatprep.subr.bf16.mxu0 0
        %360 = vmatpush1.bf16.msra.mxu0 0
        %361 = vmatprep.subr.bf16.mxu0 0
        %362 = vmatpush1.bf16.msra.mxu0 0
        %363 = vmatprep.subr.bf16.mxu0 0
        %364 = vmatpush1.bf16.msra.mxu0 0
        %365 = vmatprep.mubr.bf16.mxu0 0
        %366 = vmatmul.mubr.bf16.gmra.mrb[0].mxu0 %v283
        %v367 = vpop.f32.mrb[0].mxu0
        %v368 = vadd.f32 0.0, %v367
        %v369 = vpop.f32.mrb[0].mxu0
        %v370 = vpop.f32.mrb[0].mxu0
        %v371 = vadd.f32 0.0, %v370
        %v372 = vpop.f32.mrb[0].mxu0
        %373 = vdwg.mxu0
        %v374 = vadd.f32 %v277, %v368
        %v375 = vadd.f32 %v278, %v371
        %376 = vst [vmem:[#allocation2] sm:$0xff] %v374
        %377 = vst [vmem:[#allocation2 + $0x8] sm:$0xff] %v375
        %v378 = vld [vmem:[#allocation3] sm:$0xff]
        %v379 = vld [vmem:[#allocation3 + $0x8] sm:$0xff]
        %v380 = vunpack.c.l.bf16 %v259
        %v381 = vunpack.c.l.bf16 %v260
        %382 = vadd.xlane.f32.xlu0 %v380
        %v383 = vpop.xlane.xlu0 %382
        %384 = vadd.xlane.f32.xlu0 %v381
        %v385 = vpop.xlane.xlu0 %384
        %v386 = vadd.f32 %v378, %v383
        %v387 = vadd.f32 %v379, %v385
        %vm388 = vcmask 7168
        %389 = vst.msk [vmem:[#allocation3] sm:$0xff] %vm388, %v386
        %390 = vst.msk [vmem:[#allocation3 + $0x8] sm:$0xff] %vm388, %v387
        // Predicated region
        $region41: #{tpu_custom_call.1} parent=27 // pred_check
          %p391 = pneg %p250
        $region42: #{tpu_custom_call.1} parent=27 // pred_check_branch
          %393 = sbr.rel (%p391) target = $region44
        $region43: #{tpu_custom_call.1} parent=27 // pred_region
          %v394 = vld [vmem:[#allocation2] sm:$0xff]
          %v395 = vld [vmem:[#allocation2 + $0x8] sm:$0xff]
          %v396 = vld [vmem:[#allocation3] sm:$0xff]
          %v397 = vld [vmem:[#allocation3 + $0x8] sm:$0xff]
          %vm398 = vcmp.eq.f32.partialorder %v396, 0.0
          %vm399 = vcmp.eq.f32.partialorder %v397, 0.0
          %v400 = vrcp.pop %v396
          %v401 = vmul.f32 1.0, %v400
          %v402 = vrcp.pop %v397
          %v403 = vmul.f32 1.0, %v402
          %v404 = vsel %vm398, 0.0, %v401
          %v405 = vsel %vm399, 0.0, %v403
          %407 = vset.pattern.permute.xlu0 0
          %408 = vperm.xlu0 %407, %v404
          %v409 = vpop.permute.xlu0 %408
          %412 = vset.pattern.permute.xlu0 0
          %413 = vperm.xlu0 %412, %v405
          %v414 = vpop.permute.xlu0 %413
          %v416 = vmul.f32 %v409, %v394
          %v417 = vmul.f32 %v414, %v395
          %418 = vst [vmem:[%s245] sm:$0xff] %v416
          %419 = vst [vmem:[%s245 + $0x8] sm:$0xff] %v417
        $region44: #{tpu_custom_call.1} parent=27 // pred_fallthru
          _
        %s420 = sand.u32 %s120, 1
        %s421 = scalar_lea.sflag [#allocation6], %s420
        %s422 = sand.u32 %s120, 1
        %s423 = smul.addr %s422, 16
        %s424 = scalar_lea.vmem [#allocation9], %s423
        // Predicated region
        $region45: #{tpu_custom_call.1} parent=27 // pred_check
          %p425 = pneg %p130
        $region46: #{tpu_custom_call.1} parent=27 // pred_check_branch
          %427 = sbr.rel (%p425) target = $region48
        $region47: #{tpu_custom_call.1} parent=27 // pred_region
          %s428 = smul.u32 2, %s29
          %s430 = ssub.s32 256, 256
          %431 = vsyncadd %s421, %s430
          %s432 = sadd.s32 %s30, %s428
          %s433 = smul.addr %s28, 2
          %s434 = sadd.s32 %s432, %s433
          %s435 = smul.addr %s434, 128
          %s436 = scalar_lea.hbm %s2, %s435
          %s437 = sshll.u32 %s424, 4
          %s438 = int_to_ptr.vmem [resolvable:$true] %s437
          %443 = dma.vmem_to_hbm [thread:$0]  %s438, 256, %s436, %s421, 128, 128, 8
        $region48: #{tpu_custom_call.1} parent=27 // pred_fallthru
          _
      $region28: #{tpu_custom_call.1} parent=5 // pred_fallthru
        _
      %p444 = scmp.le.s32.totalorder 2, %s17
      // Predicated region
      $region49: #{tpu_custom_call.1} parent=5 // pred_check
        %p445 = pneg %p444
      $region50: #{tpu_custom_call.1} parent=5 // pred_check_branch
        %447 = sbr.rel (%p445) target = $region52
      $region51: #{tpu_custom_call.1} parent=5 // pred_region
        %s448 = ssub.s32 %s17, 2
        // Predicated region
        $region53: #{tpu_custom_call.1} parent=51 // pred_check
          %p449 = pneg %p136
        $region54: #{tpu_custom_call.1} parent=51 // pred_check_branch
          %451 = sbr.rel (%p449) target = $region56
        $region55: #{tpu_custom_call.1} parent=51 // pred_region
          %s452 = sand.u32 %s121, 1
          %s453 = scalar_lea.sflag [#allocation6], %s452
          %s454 = sand.u32 %s121, 1
          %s455 = smul.addr %s454, 16
          %s456 = scalar_lea.vmem [#allocation9], %s455
          %457 = dma.done %s453, 256
        $region56: #{tpu_custom_call.1} parent=51 // pred_fallthru
          _
      $region52: #{tpu_custom_call.1} parent=5 // pred_fallthru
        _
    $region6: #{tpu_custom_call.1} parent=1 // loop_footer
      %s21 = sadd.s32 1, %s17
    $region7: #{tpu_custom_call.1} parent=1 // loop_footer_branch
      %16 = sbr.rel target = $region3
    $region8: #{tpu_custom_call.1} parent=1 // loop_exit
      _
    %458 = vsyncpa [#allocation5], 1
    %s459 = scalar_lea.sflag [#allocation5], 1
    %460 = vsyncpa %s459, 1
    %461 = vsyncpa [#allocation8], 1
    %s462 = scalar_lea.sflag [#allocation8], 1
    %463 = vsyncpa %s462, 1
    %464 = vsyncpa [#allocation6], 1
    %s465 = scalar_lea.sflag [#allocation6], 1
    %466 = vsyncpa %s465, 1

</llo_original>
